<compile_context>
chip_gen: v6e
topology: v6e:2x2x1
jax: 0.10.0
libtpu: 0.0.40
codegen_flags: <defaults>
</compile_context>

<pallas_src>
import jax
import jax.numpy as jnp
from functools import partial
from jax.experimental import pallas as pl
from jax.experimental.pallas import tpu as pltpu


def up_conv_kernel(x_ref, wt_ref, shift_ref, o_ref, *, th, w):
    """One (batch, row-block) tile of fused upsample(x2) + conv3x3 + BN + ReLU.

    x_ref:     (1, 1, Cin, Sp)       bf16  channel-major, flattened (row*(W+2)+col) padded
                                           original-resolution rows (TH+2 rows incl. halo,
                                           plus 2 slack elements).
    wt_ref:    (4*Cout, 9*Cin)       bf16  phase-packed, BN-scale-folded conv weight.
    shift_ref: (4*Cout, 1)           f32   folded conv-bias + BN shift.
    o_ref:     (1, 1, 4*Cout, TH*W)  f32   phase*channel on sublanes, pixels on lanes.
    """
    wp2 = w + 2
    span = th * wp2                               # TH rows of pixels incl. the 2 pad columns
    xb = x_ref[0, 0]                              # (Cin, Sp)

    # Transposed im2col: 9 shifted, lane-contiguous views of the flattened padded rows.
    taps = []
    for dy in range(3):
        for dx in range(3):
            s0 = dy * wp2 + dx
            taps.append(xb[:, s0:s0 + span])      # (Cin, span)
    patch_t = jnp.concatenate(taps, axis=0)       # (9*Cin, span)

    # Single MXU matmul, f32 accumulation.
    acc = jnp.dot(wt_ref[...], patch_t, preferred_element_type=jnp.float32)  # (4*Cout, span)
    y = jnp.maximum(acc + shift_ref[...], 0.0)    # folded bias/BN + ReLU (f32 epilogue)

    # Drop the 2 pad columns of every row -> lane-dense (4*Cout, TH*W) slab, one dense store.
    y = jnp.concatenate([y[:, i * wp2:i * wp2 + w] for i in range(th)], axis=-1)
    o_ref[...] = y[None, None].astype(o_ref.dtype)


def _pick_row_tile(H, W, c_in, c_out, vmem_budget_bytes=10 * 1024 * 1024):
    """Largest divisor of H whose block fits a per-block VMEM budget (big tiles amortise
    per-grid-step overhead and give the MXU more lanes per matmul)."""
    wp2 = W + 2
    # Rough per-lane (per original-res pixel incl. pad cols) VMEM cost of the dominant
    # live values: taps (9*Cin bf16, plus a transient copy), acc+y (4*Cout f32),
    # double-buffered input (Cin bf16) and output (4*Cout f32) streams.
    per_lane = (9 * c_in * 2) * 2 + (4 * c_out * 4) * 2 + (c_in * 2) * 2 + (4 * c_out * 4) * 2
    max_span = max(wp2, vmem_budget_bytes // max(per_lane, 1))
    max_rows = max(1, min(H, max_span // wp2))
    th = 1
    for d in range(1, max_rows + 1):
        if H % d == 0:
            th = d
    return th


def up_conv_forward(x_nchw, w_hwio, conv_bias, gamma, beta,
                    running_mean, running_var, eps=1e-5):
    """Forward pass of up_conv.  Input/output are NCHW (PyTorch convention)."""
    B, Cin, H, W = x_nchw.shape
    Cout = w_hwio.shape[3]
    C4 = 4 * Cout
    orig_dtype = x_nchw.dtype

    # ---- fold conv bias + inference BatchNorm; fold the scale into the conv weight ----
    scale = gamma / jnp.sqrt(running_var + eps)
    shift = (conv_bias - running_mean) * scale + beta
    w_s = (w_hwio * scale[None, None, None, :]).astype(jnp.float32)      # (3,3,Cin,Cout)

    # ---- fuse the x2 nearest upsample: build the phase-packed weight over the 3x3
    #      neighbourhood of the padded ORIGINAL-resolution input ----
    w_big = jnp.zeros((3, 3, Cin, 2, 2, Cout), dtype=jnp.float32)
    for pa in range(2):
        for pb in range(2):
            for dyu in (-1, 0, 1):
                for dxu in (-1, 0, 1):
                    ty = 1 + (pa + dyu) // 2       # tap row in the padded orig-res window
                    tx = 1 + (pb + dxu) // 2
                    w_big = w_big.at[ty, tx, :, pa, pb, :].add(w_s[dyu + 1, dxu + 1])
    # Transposed for the kernel's (4*Cout, 9*Cin) @ (9*Cin, pixels) matmul.
    w_t = w_big.transpose(3, 4, 5, 0, 1, 2).reshape(C4, 9 * Cin).astype(jnp.bfloat16)
    shift_col = jnp.tile(shift, 4).reshape(C4, 1).astype(jnp.float32)

    # ---- row-tiled, channel-major, spatially flattened input blocks (1-row halo) ----
    TH = _pick_row_tile(H, W, Cin, Cout)
    NB = H // TH
    wp2 = W + 2
    sp = (TH + 2) * wp2 + 2                        # +2 slack so the last tap slice is in-bounds
    xp = jnp.pad(x_nchw, ((0, 0), (0, 0), (1, 1), (1, 1))).astype(jnp.bfloat16)  # (B,Cin,H+2,W+2)
    blocks = jnp.stack([xp[:, :, t * TH:t * TH + TH + 2, :] for t in range(NB)], axis=1)
    blocks = blocks.reshape(B, NB, Cin, (TH + 2) * wp2)
    blocks = jnp.pad(blocks, ((0, 0), (0, 0), (0, 0), (0, 2)))                   # (B,NB,Cin,sp)

    span = TH * wp2
    cost = pl.CostEstimate(
        flops=2 * B * NB * C4 * (9 * Cin) * span,
        transcendentals=0,
        bytes_accessed=(B * NB * Cin * sp * 2 + C4 * 9 * Cin * 2 + C4 * 4
                        + B * NB * C4 * TH * W * 4),
    )

    kernel = partial(up_conv_kernel, th=TH, w=W)
    out_raw = pl.pallas_call(
        kernel,
        out_shape=jax.ShapeDtypeStruct((B, NB, C4, TH * W), jnp.float32),
        grid_spec=pltpu.PrefetchScalarGridSpec(
            num_scalar_prefetch=0,
            grid=(B, NB),
            in_specs=[
                pl.BlockSpec((1, 1, Cin, sp), lambda bi, ti: (bi, ti, 0, 0)),
                pl.BlockSpec((C4, 9 * Cin), lambda bi, ti: (0, 0)),
                pl.BlockSpec((C4, 1), lambda bi, ti: (0, 0)),
            ],
            out_specs=pl.BlockSpec((1, 1, C4, TH * W), lambda bi, ti: (bi, ti, 0, 0)),
        ),
        compiler_params=pltpu.CompilerParams(
            dimension_semantics=("parallel", "parallel"),
            vmem_limit_bytes=32 * 1024 * 1024,
        ),
        cost_estimate=cost,
    )(blocks, w_t, shift_col)

    # ---- decode: out_raw[b, t, (a*2+pb)*Cout+co, i*W+j] -> NCHW[b, co, 2*(t*TH+i)+a, 2*j+pb]
    out = out_raw.reshape(B, NB, 2, 2, Cout, TH, W)
    out = out.transpose(0, 4, 1, 5, 2, 6, 3).reshape(B, Cout, 2 * H, 2 * W)
    return out.astype(orig_dtype)


def up_conv_reference(x_nchw, w_hwio, conv_bias, gamma, beta,
                      running_mean, running_var, eps=1e-5):
    """Pure-JAX reference (no Pallas) for correctness checking."""
    x = jnp.transpose(x_nchw, (0, 2, 3, 1))
    x = jnp.repeat(jnp.repeat(x, 2, axis=1), 2, axis=2)
    y = jax.lax.conv_general_dilated(
        x, w_hwio, window_strides=(1, 1), padding="SAME",
        dimension_numbers=("NHWC", "HWIO", "NHWC"))
    y = y + conv_bias[None, None, None, :]
    y = (y - running_mean) / jnp.sqrt(running_var + eps) * gamma + beta
    y = jnp.maximum(y, 0.0)
    return jnp.transpose(y, (0, 3, 1, 2))


if __name__ == "__main__":
    # Small shapes consistent with the module: batch=2, ch_in=4, ch_out=8, spatial=16.
    B, C_IN, C_OUT, H, W = 2, 4, 8, 16, 16

    key = jax.random.PRNGKey(0)
    k_x, k_w, k_b, k_g, k_be, k_rm, k_rv = jax.random.split(key, 7)

    x = jax.random.normal(k_x, (B, C_IN, H, W), dtype=jnp.float32)
    # Conv weight in HWIO layout (PyTorch OIHW transposed), deterministic init.
    w = jax.random.normal(k_w, (3, 3, C_IN, C_OUT), dtype=jnp.float32) * 0.1
    conv_bias = jax.random.normal(k_b, (C_OUT,), dtype=jnp.float32) * 0.1
    # BatchNorm2d parameters / running stats.
    # TODO(synk): PyTorch default (training-mode) BN would use batch statistics;
    # inference-mode running-stat BN is implemented here with deterministic stats.
    gamma = 1.0 + 0.1 * jax.random.normal(k_g, (C_OUT,), dtype=jnp.float32)
    beta = 0.1 * jax.random.normal(k_be, (C_OUT,), dtype=jnp.float32)
    running_mean = 0.1 * jax.random.normal(k_rm, (C_OUT,), dtype=jnp.float32)
    running_var = jnp.abs(1.0 + 0.1 * jax.random.normal(k_rv, (C_OUT,), dtype=jnp.float32))

    out = up_conv_forward(x, w, conv_bias, gamma, beta, running_mean, running_var)
    out = jax.block_until_ready(out)

    ref = up_conv_reference(x, w, conv_bias, gamma, beta, running_mean, running_var)
    ref = jax.block_until_ready(ref)

    assert out.shape == (B, C_OUT, 2 * H, 2 * W), out.shape
    # bf16 activations/weights into the MXU (f32 accumulation) -> loosened tolerance.
    assert jnp.allclose(out, ref, atol=5e-2, rtol=5e-2), float(jnp.max(jnp.abs(out - ref)))

    print("KERNEL_OK")
</pallas_src>

<mosaic_0001>
module attributes {stable_mosaic.version = 11 : i64} {
  func.func @up_conv_kernel(%arg0: i32, %arg1: i32, %arg2: memref<1x1x4x326xbf16, #tpu.memory_space<vmem>>, %arg3: memref<32x36xbf16, #tpu.memory_space<vmem>>, %arg4: memref<32x1xf32, #tpu.memory_space<vmem>>, %arg5: memref<1x1x32x256xf32, #tpu.memory_space<vmem>>) attributes {dimension_semantics = [#tpu.dimension_semantics<parallel>, #tpu.dimension_semantics<parallel>], iteration_bounds = array<i64: 2, 1>, scalar_prefetch = 0 : i64, scratch_operands = 0 : i64, tpu.core_type = #tpu.core_type<tc>, window_params = [{transform_indices = @transform_0, window_bounds = array<i64: 1, 1, 4, 326>}, {pipeline_mode = #tpu.pipeline_mode<synchronous>, transform_indices = @transform_1, window_bounds = array<i64: 32, 36>}, {pipeline_mode = #tpu.pipeline_mode<synchronous>, transform_indices = @transform_2, window_bounds = array<i64: 32, 1>}, {transform_indices = @transform_3, window_bounds = array<i64: 1, 1, 32, 256>}]} {
    %c0 = arith.constant 0 : index
    %c0_0 = arith.constant 0 : index
    %c0_1 = arith.constant 0 : index
    %c0_2 = arith.constant 0 : index
    %0 = vector.load %arg2[%c0, %c0_0, %c0_1, %c0_2] : memref<1x1x4x326xbf16, #tpu.memory_space<vmem>>, vector<1x1x4x326xbf16>
    %1 = vector.shape_cast %0 : vector<1x1x4x326xbf16> to vector<4x326xbf16>
    %2 = vector.extract_strided_slice %1 {offsets = [0, 0], sizes = [4, 288], strides = [1, 1]} : vector<4x326xbf16> to vector<4x288xbf16>
    %3 = vector.extract_strided_slice %1 {offsets = [0, 1], sizes = [4, 288], strides = [1, 1]} : vector<4x326xbf16> to vector<4x288xbf16>
    %4 = vector.extract_strided_slice %1 {offsets = [0, 2], sizes = [4, 288], strides = [1, 1]} : vector<4x326xbf16> to vector<4x288xbf16>
    %5 = vector.extract_strided_slice %1 {offsets = [0, 18], sizes = [4, 288], strides = [1, 1]} : vector<4x326xbf16> to vector<4x288xbf16>
    %6 = vector.extract_strided_slice %1 {offsets = [0, 19], sizes = [4, 288], strides = [1, 1]} : vector<4x326xbf16> to vector<4x288xbf16>
    %7 = vector.extract_strided_slice %1 {offsets = [0, 20], sizes = [4, 288], strides = [1, 1]} : vector<4x326xbf16> to vector<4x288xbf16>
    %8 = vector.extract_strided_slice %1 {offsets = [0, 36], sizes = [4, 288], strides = [1, 1]} : vector<4x326xbf16> to vector<4x288xbf16>
    %9 = vector.extract_strided_slice %1 {offsets = [0, 37], sizes = [4, 288], strides = [1, 1]} : vector<4x326xbf16> to vector<4x288xbf16>
    %10 = vector.extract_strided_slice %1 {offsets = [0, 38], sizes = [4, 288], strides = [1, 1]} : vector<4x326xbf16> to vector<4x288xbf16>
    %11 = tpu.concatenate %2, %3, %4, %5, %6, %7, %8, %9, %10 in 0 : vector<4x288xbf16>, vector<4x288xbf16>, vector<4x288xbf16>, vector<4x288xbf16>, vector<4x288xbf16>, vector<4x288xbf16>, vector<4x288xbf16>, vector<4x288xbf16>, vector<4x288xbf16> -> vector<36x288xbf16>
    %c0_3 = arith.constant 0 : index
    %c0_4 = arith.constant 0 : index
    %12 = vector.load %arg3[%c0_3, %c0_4] : memref<32x36xbf16, #tpu.memory_space<vmem>>, vector<32x36xbf16>
    %cst = arith.constant dense<0.000000e+00> : vector<32x288xf32>
    %13 = tpu.matmul %12, %11, %cst {dimension_numbers = #tpu.dot_dimension_numbers<[1], [0], [0], [1], [0, 0, 1, 1], [], []>} : vector<32x36xbf16>, vector<36x288xbf16>, vector<32x288xf32> -> vector<32x288xf32>
    %c0_5 = arith.constant 0 : index
    %c0_6 = arith.constant 0 : index
    %14 = vector.load %arg4[%c0_5, %c0_6] : memref<32x1xf32, #tpu.memory_space<vmem>>, vector<32x1xf32>
    %15 = vector.broadcast %14 : vector<32x1xf32> to vector<32x288xf32>
    %16 = arith.addf %13, %15 : vector<32x288xf32>
    %cst_7 = arith.constant 0.000000e+00 : f32
    %17 = vector.broadcast %cst_7 : f32 to vector<32x288xf32>
    %18 = arith.maximumf %16, %17 : vector<32x288xf32>
    %19 = vector.extract_strided_slice %18 {offsets = [0, 0], sizes = [32, 16], strides = [1, 1]} : vector<32x288xf32> to vector<32x16xf32>
    %20 = vector.extract_strided_slice %18 {offsets = [0, 18], sizes = [32, 16], strides = [1, 1]} : vector<32x288xf32> to vector<32x16xf32>
    %21 = vector.extract_strided_slice %18 {offsets = [0, 36], sizes = [32, 16], strides = [1, 1]} : vector<32x288xf32> to vector<32x16xf32>
    %22 = vector.extract_strided_slice %18 {offsets = [0, 54], sizes = [32, 16], strides = [1, 1]} : vector<32x288xf32> to vector<32x16xf32>
    %23 = vector.extract_strided_slice %18 {offsets = [0, 72], sizes = [32, 16], strides = [1, 1]} : vector<32x288xf32> to vector<32x16xf32>
    %24 = vector.extract_strided_slice %18 {offsets = [0, 90], sizes = [32, 16], strides = [1, 1]} : vector<32x288xf32> to vector<32x16xf32>
    %25 = vector.extract_strided_slice %18 {offsets = [0, 108], sizes = [32, 16], strides = [1, 1]} : vector<32x288xf32> to vector<32x16xf32>
    %26 = vector.extract_strided_slice %18 {offsets = [0, 126], sizes = [32, 16], strides = [1, 1]} : vector<32x288xf32> to vector<32x16xf32>
    %27 = vector.extract_strided_slice %18 {offsets = [0, 144], sizes = [32, 16], strides = [1, 1]} : vector<32x288xf32> to vector<32x16xf32>
    %28 = vector.extract_strided_slice %18 {offsets = [0, 162], sizes = [32, 16], strides = [1, 1]} : vector<32x288xf32> to vector<32x16xf32>
    %29 = vector.extract_strided_slice %18 {offsets = [0, 180], sizes = [32, 16], strides = [1, 1]} : vector<32x288xf32> to vector<32x16xf32>
    %30 = vector.extract_strided_slice %18 {offsets = [0, 198], sizes = [32, 16], strides = [1, 1]} : vector<32x288xf32> to vector<32x16xf32>
    %31 = vector.extract_strided_slice %18 {offsets = [0, 216], sizes = [32, 16], strides = [1, 1]} : vector<32x288xf32> to vector<32x16xf32>
    %32 = vector.extract_strided_slice %18 {offsets = [0, 234], sizes = [32, 16], strides = [1, 1]} : vector<32x288xf32> to vector<32x16xf32>
    %33 = vector.extract_strided_slice %18 {offsets = [0, 252], sizes = [32, 16], strides = [1, 1]} : vector<32x288xf32> to vector<32x16xf32>
    %34 = vector.extract_strided_slice %18 {offsets = [0, 270], sizes = [32, 16], strides = [1, 1]} : vector<32x288xf32> to vector<32x16xf32>
    %35 = tpu.concatenate %19, %20, %21, %22, %23, %24, %25, %26, %27, %28, %29, %30, %31, %32, %33, %34 in 1 : vector<32x16xf32>, vector<32x16xf32>, vector<32x16xf32>, vector<32x16xf32>, vector<32x16xf32>, vector<32x16xf32>, vector<32x16xf32>, vector<32x16xf32>, vector<32x16xf32>, vector<32x16xf32>, vector<32x16xf32>, vector<32x16xf32>, vector<32x16xf32>, vector<32x16xf32>, vector<32x16xf32>, vector<32x16xf32> -> vector<32x256xf32>
    %36 = vector.shape_cast %35 : vector<32x256xf32> to vector<1x1x32x256xf32>
    %c0_8 = arith.constant 0 : index
    %c0_9 = arith.constant 0 : index
    %c0_10 = arith.constant 0 : index
    %c0_11 = arith.constant 0 : index
    %37 = vector.load %arg5[%c0_8, %c0_9, %c0_10, %c0_11] : memref<1x1x32x256xf32, #tpu.memory_space<vmem>>, vector<1x1x32x256xf32>
    tpu.vector_store %arg5[%c0_8, %c0_9, %c0_10, %c0_11], %36 {strides = array<i32>} : memref<1x1x32x256xf32, #tpu.memory_space<vmem>>, vector<1x1x32x256xf32>,
    return
  }
  func.func @transform_0(%arg0: i32, %arg1: i32) -> (i32, i32, i32, i32) {
    %c0_i32 = arith.constant 0 : i32
    %c0_i32_0 = arith.constant 0 : i32
    %c0_i32_1 = arith.constant 0 : i32
    return %arg0, %arg1, %c0_i32, %c0_i32_0 : i32, i32, i32, i32
  }
  func.func @transform_1(%arg0: i32, %arg1: i32) -> (i32, i32) {
    %c0_i32 = arith.constant 0 : i32
    %c0_i32_0 = arith.constant 0 : i32
    %c0_i32_1 = arith.constant 0 : i32
    return %c0_i32, %c0_i32_0 : i32, i32
  }
  func.func @transform_2(%arg0: i32, %arg1: i32) -> (i32, i32) {
    %c0_i32 = arith.constant 0 : i32
    %c0_i32_0 = arith.constant 0 : i32
    %c0_i32_1 = arith.constant 0 : i32
    return %c0_i32, %c0_i32_0 : i32, i32
  }
  func.func @transform_3(%arg0: i32, %arg1: i32) -> (i32, i32, i32, i32) {
    %c0_i32 = arith.constant 0 : i32
    %c0_i32_0 = arith.constant 0 : i32
    %c0_i32_1 = arith.constant 0 : i32
    return %arg0, %arg1, %c0_i32, %c0_i32_0 : i32, i32, i32, i32
  }
}

</mosaic_0001>

<llo_original>
// kernel: tpu_custom_call.1
$region0: #{tpu_custom_call.1}
  #allocation0 [shape = 'u32[]', space=smem, size = 0x4, offset = 0x4, fixed_abs, tag = 'smem constant byte address 0x4 - core index']
  #allocation1 [shape = 'u32[144,128]{1,0:T(1,128)}', space=vmem, size = 0x12000, scoped, tag = 'internal scratch']
  %s0 = inlined_call_operand.vmem [shape: bf16[2,1,4,326], index: 0, kind: input, shape index: {}]
  %s1 = inlined_call_operand.vmem [shape: bf16[32,36], index: 1, kind: input, shape index: {}]
  %s2 = inlined_call_operand.vmem [shape: f32[32,1], index: 2, kind: input, shape index: {}]
  %s3 = inlined_call_operand.hbm [shape: f32[2,1,32,256], index: 3, kind: output, shape index: {}]
  %s4 = sld [smem:[#allocation0]]
  $region45: #{tpu_custom_call.1} parent=0
    _
  %s6 = ssub.s32 1, %s4
  %s7 = scalar_select 0, %s6, %s4
  $region1: #{tpu_custom_call.1} parent=0
    #allocation2 [shape = 'u8[65536]{0}', space=vmem, size = 0x10000, scoped, tag = 'output window, operand 0']
    #allocation3 [shape = 's32[2]{0}', space=sflag, size = 0x8, scoped, tag = 'scoped memory for tpu_custom_call.1']
    %8 = vsyncpa [#allocation3], 0
    %s9 = scalar_lea.sflag [#allocation3], 1
    %10 = vsyncpa %s9, 0
    loop: start=0, step=1, limit=4
    $region2: #{tpu_custom_call.1} parent=1 // loop_pre_header
      _
    $region3: #{tpu_custom_call.1} parent=1 // loop_header
      %s12 = sphi 0, %s16
      %p13 = scmp.ge.s32.totalorder %s12, 4
      %s19 = sphi 0, %s31
      %s20 = sphi 0, %s27
      %s21 = sphi 0, %s19
      %s22 = sphi 0, %s20
      %s23 = sphi 0, %s21
      %s24 = sphi 0, %s22
      %s36 = sphi 0, %s38
      %s39 = sphi 0, %s36
      %s40 = sphi 0, %s39
      %s56 = sphi 0, %s40
      %s60 = sphi 0, %s60
      %s62 = sphi 0, %s60
      %s63 = sphi 0, %s62
      %s77 = sphi 0, %s63
      %s81 = sphi 0, %s81
      %s83 = sphi 0, %s81
      %s84 = sphi 0, %s83
      %s98 = sphi 0, %s84
      %s106 = sphi 0, %s108
      %s109 = sphi 0, %s106
      %s110 = sphi 0, %s109
      %s126 = sphi 0, %s110
    $region4: #{tpu_custom_call.1} parent=1 // loop_header_branch
      %15 = sbr.rel (%p13) target = $region8
    $region5: #{tpu_custom_call.1} parent=1 // loop_body
      %s17 = ssub.s32 %s12, 1
      %s18 = ssub.s32 %s12, 2
      %s25 = sadd.s32 1, %s20
      %p26 = scmp.ge.s32.totalorder %s25, 1
      %s27 = scalar_select %p26, 0, %s25
      %s28 = sadd.s32 1, %s19
      %s29 = scalar_select %p26, %s28, %s19
      %p30 = scmp.ge.s32.totalorder %s29, 2
      %s31 = scalar_select %p30, 0, %s29
      %s32 = ssub.s32 %s19, %s31
      %s33 = ssub.s32 %s20, %s27
      %s34 = sor.u32 %s32, %s33
      %p35 = scmp.eq.s32.totalorder %s34, 0
      %s37 = sadd.s32 %s36, 1
      %s38 = scalar_select %p35, %s36, %s37
      %p41 = pneg %p35
      %p42 = scmp.eq.s32.totalorder %s12, 1
      %p43 = por %p41, %p42
      %p44 = scmp.ne.s32.totalorder %s36, %s39
      %p45 = scmp.eq.s32.totalorder %s12, 0
      %p46 = por %p44, %p45
      %p47 = scmp.ne.s32.totalorder %s36, %s39
      %p48 = scmp.eq.s32.totalorder %s17, 1
      %p49 = por %p47, %p48
      %p50 = scmp.ne.s32.totalorder %s39, %s40
      %p51 = scmp.eq.s32.totalorder %s17, 0
      %p52 = por %p50, %p51
      %p53 = scmp.ne.s32.totalorder %s39, %s40
      %p54 = scmp.eq.s32.totalorder %s18, 1
      %p55 = por %p53, %p54
      %p57 = scmp.ne.s32.totalorder %s40, %s56
      %p58 = scmp.eq.s32.totalorder %s18, 0
      %p59 = por %p57, %p58
      %s61 = sadd.s32 %s60, 1
      %p64 = scmp.eq.s32.totalorder %s12, 1
      %p65 = scmp.ne.s32.totalorder %s60, %s62
      %p66 = scmp.eq.s32.totalorder %s12, 0
      %p67 = por %p65, %p66
      %p68 = scmp.ne.s32.totalorder %s60, %s62
      %p69 = scmp.eq.s32.totalorder %s17, 1
      %p70 = por %p68, %p69
      %p71 = scmp.ne.s32.totalorder %s62, %s63
      %p72 = scmp.eq.s32.totalorder %s17, 0
      %p73 = por %p71, %p72
      %p74 = scmp.ne.s32.totalorder %s62, %s63
      %p75 = scmp.eq.s32.totalorder %s18, 1
      %p76 = por %p74, %p75
      %p78 = scmp.ne.s32.totalorder %s63, %s77
      %p79 = scmp.eq.s32.totalorder %s18, 0
      %p80 = por %p78, %p79
      %s82 = sadd.s32 %s81, 1
      %p85 = scmp.eq.s32.totalorder %s12, 1
      %p86 = scmp.ne.s32.totalorder %s81, %s83
      %p87 = scmp.eq.s32.totalorder %s12, 0
      %p88 = por %p86, %p87
      %p89 = scmp.ne.s32.totalorder %s81, %s83
      %p90 = scmp.eq.s32.totalorder %s17, 1
      %p91 = por %p89, %p90
      %p92 = scmp.ne.s32.totalorder %s83, %s84
      %p93 = scmp.eq.s32.totalorder %s17, 0
      %p94 = por %p92, %p93
      %p95 = scmp.ne.s32.totalorder %s83, %s84
      %p96 = scmp.eq.s32.totalorder %s18, 1
      %p97 = por %p95, %p96
      %p99 = scmp.ne.s32.totalorder %s84, %s98
      %p100 = scmp.eq.s32.totalorder %s18, 0
      %p101 = por %p99, %p100
      %s102 = ssub.s32 %s19, %s31
      %s103 = ssub.s32 %s20, %s27
      %s104 = sor.u32 %s102, %s103
      %p105 = scmp.eq.s32.totalorder %s104, 0
      %s107 = sadd.s32 %s106, 1
      %s108 = scalar_select %p105, %s106, %s107
      %p111 = pneg %p105
      %p112 = scmp.eq.s32.totalorder %s12, 1
      %p113 = por %p111, %p112
      %p114 = scmp.ne.s32.totalorder %s106, %s109
      %p115 = scmp.eq.s32.totalorder %s12, 0
      %p116 = por %p114, %p115
      %p117 = scmp.ne.s32.totalorder %s106, %s109
      %p118 = scmp.eq.s32.totalorder %s17, 1
      %p119 = por %p117, %p118
      %p120 = scmp.ne.s32.totalorder %s109, %s110
      %p121 = scmp.eq.s32.totalorder %s17, 0
      %p122 = por %p120, %p121
      %p123 = scmp.ne.s32.totalorder %s109, %s110
      %p124 = scmp.eq.s32.totalorder %s18, 1
      %p125 = por %p123, %p124
      %p127 = scmp.ne.s32.totalorder %s110, %s126
      %p128 = scmp.eq.s32.totalorder %s18, 0
      %p129 = por %p127, %p128
      %p130 = scmp.le.s32.totalorder 1, %s12
      %p131 = scmp.lt.s32.totalorder %s12, 3
      %p132 = pnand %p130, %p131
      %p133 = pneg %p132
      // Predicated region
      $region9: #{tpu_custom_call.1} parent=5 // pred_check
        _
      $region10: #{tpu_custom_call.1} parent=5 // pred_check_branch
        %135 = sbr.rel (%p132) target = $region12
      $region11: #{tpu_custom_call.1} parent=5 // pred_region
        %s136 = ssub.s32 %s12, 1
        // Predicated region
        $region13: #{tpu_custom_call.1} parent=11 // pred_check
          %p137 = pneg %p73
        $region14: #{tpu_custom_call.1} parent=11 // pred_check_branch
          %139 = sbr.rel (%p137) target = $region16
        $region15: #{tpu_custom_call.1} parent=11 // pred_region
          _
        $region16: #{tpu_custom_call.1} parent=11 // pred_fallthru
          _
        // Predicated region
        $region17: #{tpu_custom_call.1} parent=11 // pred_check
          %p140 = pneg %p94
        $region18: #{tpu_custom_call.1} parent=11 // pred_check_branch
          %142 = sbr.rel (%p140) target = $region20
        $region19: #{tpu_custom_call.1} parent=11 // pred_region
          _
        $region20: #{tpu_custom_call.1} parent=11 // pred_fallthru
          _
      $region12: #{tpu_custom_call.1} parent=5 // pred_fallthru
        _
      %p143 = scmp.lt.s32.totalorder %s12, 2
      // Predicated region
      $region21: #{tpu_custom_call.1} parent=5 // pred_check
        %p144 = pneg %p143
      $region22: #{tpu_custom_call.1} parent=5 // pred_check_branch
        %146 = sbr.rel (%p144) target = $region24
      $region23: #{tpu_custom_call.1} parent=5 // pred_region
        // Predicated region
        $region25: #{tpu_custom_call.1} parent=23 // pred_check
          %p147 = pneg %p46
        $region26: #{tpu_custom_call.1} parent=23 // pred_check_branch
          %149 = sbr.rel (%p147) target = $region28
        $region27: #{tpu_custom_call.1} parent=23 // pred_region
          %p150 = scmp.lt.s32.totalorder %s19, 1
          %s151 = scalar_select %p150, %s19, 1
          %p152 = scmp.lt.s32.totalorder %s20, 0
          %s153 = scalar_select %p152, %s20, 0
          %s154 = smul.addr %s153, 3
          %s155 = smul.addr %s151, 3
          %s156 = sadd.s32 %s154, %s155
          %s157 = smul.addr %s156, 2
          %s158 = scalar_lea.vmem %s0, %s157
        $region28: #{tpu_custom_call.1} parent=23 // pred_fallthru
          _
      $region24: #{tpu_custom_call.1} parent=5 // pred_fallthru
        _
      %p159 = scmp.le.s32.totalorder 1, %s12
      %p160 = scmp.lt.s32.totalorder %s12, 3
      %p161 = pnand %p159, %p160
      %p162 = pneg %p161
      // Predicated region
      $region29: #{tpu_custom_call.1} parent=5 // pred_check
        _
      $region30: #{tpu_custom_call.1} parent=5 // pred_check_branch
        %164 = sbr.rel (%p161) target = $region32
      $region31: #{tpu_custom_call.1} parent=5 // pred_region
        %s165 = ssub.s32 %s12, 1
        %p166 = scmp.lt.s32.totalorder %s21, 1
        %s167 = scalar_select %p166, %s21, 1
        %p168 = scmp.lt.s32.totalorder %s22, 0
        %s169 = scalar_select %p168, %s22, 0
        %s170 = smul.addr %s169, 3
        %s171 = smul.addr %s167, 3
        %s172 = sadd.s32 %s170, %s171
        %s173 = smul.addr %s172, 2
        %s174 = scalar_lea.vmem %s0, %s173
        %p175 = pneg %p52
        %p176 = pneg %p49
        %p177 = pneg %p73
        %p178 = pneg %p70
        %p179 = pneg %p94
        %p180 = pneg %p91
        %p181 = pneg %p122
        %p182 = pneg %p119
        %s183 = sand.u32 %s109, 1
        %s184 = scalar_lea.sflag [#allocation3], %s183
        %s185 = sand.u32 %s109, 1
        %s186 = smul.addr %s185, 64
        %s187 = scalar_lea.vmem [#allocation2], %s186
        %p188 = scmp.lt.s32.totalorder %s21, 1
        %s189 = scalar_select %p188, %s21, 1
        %p190 = scmp.lt.s32.totalorder %s22, 0
        %s191 = scalar_select %p190, %s22, 0
        %s192 = smul.addr %s191, 3
        %s193 = smul.addr %s189, 3
        %s194 = sadd.s32 %s192, %s193
        %s195 = smul.addr %s194, 2
        %s196 = scalar_lea.vmem %s0, %s195
        %v198 = vld [vmem:[%s196] sm:$0x3f]
        %v200 = vcombine.high %v198, %v198
        %v202 = vunpack.c.l.s4 1983009808
        %v203 = vunpack.c.0.s8 %v202
        %v204 = vlaneseq
        %v205 = vshrl.u32 %v204, 7
        %v206 = vsub.s32 %v203, %v205
        %v207 = vrot.slane %v198, %v206
        %v209 = vunpack.c.l.s4 1983009808
        %v210 = vunpack.c.0.s8 %v209
        %v211 = vlaneseq
        %v212 = vshrl.u32 %v211, 7
        %v213 = vsub.s32 %v210, %v212
        %v214 = vrot.slane %v200, %v213
        %v215 = vcombine.high %v207, %v207
        %v216 = vcombine.low %v198, %v198
        %v218 = vunpack.c.l.s4 1983009808
        %v219 = vunpack.c.0.s8 %v218
        %v220 = vlaneseq
        %v221 = vshrl.u32 %v220, 7
        %v222 = vsub.s32 %v219, %v221
        %v223 = vrot.slane %v216, %v222
        %v224 = vcombine.high %v223, %v223
        %225 = vrot.lane.b32.xlu0 %v223, 127
        %v226 = vpop.permute.xlu0 %225
        %227 = vrot.lane.b32.xlu0 %v224, 127
        %v228 = vpop.permute.xlu0 %227
        %229 = vrot.lane.b32.xlu0 %v207, 127
        %v230 = vpop.permute.xlu0 %229
        %vm231 = vcmask 1039360
        %v232 = vsel %vm231, %v226, %v228
        %v233 = vsel %vm231, %v228, %v230
        %v234 = vcombine.low %v207, %v207
        %v235 = vcombine.low %v214, %v214
        %236 = vrot.lane.b32.xlu0 %v234, 126
        %v237 = vpop.permute.xlu0 %236
        %238 = vrot.lane.b32.xlu0 %v207, 126
        %v239 = vpop.permute.xlu0 %238
        %240 = vrot.lane.b32.xlu0 %v235, 126
        %v241 = vpop.permute.xlu0 %240
        %vm242 = vcmask 1031168
        %v243 = vsel %vm242, %v237, %v239
        %v244 = vsel %vm242, %v239, %v241
        %v245 = vcombine.low %v223, %v223
        %246 = vrot.lane.b32.xlu0 %v245, 110
        %v247 = vpop.permute.xlu0 %246
        %248 = vrot.lane.b32.xlu0 %v223, 110
        %v249 = vpop.permute.xlu0 %248
        %250 = vrot.lane.b32.xlu0 %v234, 110
        %v251 = vpop.permute.xlu0 %250
        %vm252 = vcmask 900096
        %v253 = vsel %vm252, %v247, %v249
        %v254 = vsel %vm252, %v249, %v251
        %255 = vrot.lane.b32.xlu0 %v207, 109
        %v256 = vpop.permute.xlu0 %255
        %257 = vrot.lane.b32.xlu0 %v215, 109
        %v258 = vpop.permute.xlu0 %257
        %259 = vrot.lane.b32.xlu0 %v214, 109
        %v260 = vpop.permute.xlu0 %259
        %vm261 = vcmask 891904
        %v262 = vsel %vm261, %v256, %v258
        %v263 = vsel %vm261, %v258, %v260
        %264 = vrot.lane.b32.xlu0 %v223, 108
        %v265 = vpop.permute.xlu0 %264
        %266 = vrot.lane.b32.xlu0 %v224, 108
        %v267 = vpop.permute.xlu0 %266
        %268 = vrot.lane.b32.xlu0 %v207, 108
        %v269 = vpop.permute.xlu0 %268
        %vm270 = vcmask 883712
        %v271 = vsel %vm270, %v265, %v267
        %v272 = vsel %vm270, %v267, %v269
        %273 = vrot.lane.b32.xlu0 %v234, 92
        %v274 = vpop.permute.xlu0 %273
        %275 = vrot.lane.b32.xlu0 %v207, 92
        %v276 = vpop.permute.xlu0 %275
        %277 = vrot.lane.b32.xlu0 %v235, 92
        %v278 = vpop.permute.xlu0 %277
        %vm279 = vcmask 752640
        %v280 = vsel %vm279, %v274, %v276
        %v281 = vsel %vm279, %v276, %v278
        %282 = vrot.lane.b32.xlu0 %v245, 91
        %v283 = vpop.permute.xlu0 %282
        %284 = vrot.lane.b32.xlu0 %v223, 91
        %v285 = vpop.permute.xlu0 %284
        %286 = vrot.lane.b32.xlu0 %v234, 91
        %v287 = vpop.permute.xlu0 %286
        %vm288 = vcmask 744448
        %v289 = vsel %vm288, %v283, %v285
        %v290 = vsel %vm288, %v285, %v287
        %291 = vrot.lane.b32.xlu0 %v207, 90
        %v292 = vpop.permute.xlu0 %291
        %293 = vrot.lane.b32.xlu0 %v215, 90
        %v294 = vpop.permute.xlu0 %293
        %295 = vrot.lane.b32.xlu0 %v214, 90
        %v296 = vpop.permute.xlu0 %295
        %vm297 = vcmask 736256
        %v298 = vsel %vm297, %v292, %v294
        %v299 = vsel %vm297, %v294, %v296
        %vm300 = vcmask 1041408
        %v303 = vsel %vm300, %v207, %v232
        %v306 = vsel %vm300, %v215, %v233
        %v309 = vsel %vm300, %v214, %v230
        %vm310 = vcmask 1043456
        %v312 = vsel %vm310, %v303, %v243
        %v314 = vsel %vm310, %v306, %v244
        %v316 = vsel %vm310, %v309, %v241
        %vm317 = vcmask 1045504
        %v319 = vsel %vm317, %v312, %v253
        %v322 = vsel %vm317, %v314, %v254
        %v325 = vsel %vm317, %v316, %v251
        %v329 = vsel %vm300, %v262, %v271
        %v332 = vsel %vm300, %v263, %v272
        %v335 = vsel %vm300, %v260, %v269
        %v337 = vsel %vm310, %v329, %v280
        %v339 = vsel %vm310, %v332, %v281
        %v341 = vsel %vm310, %v335, %v278
        %v343 = vsel %vm317, %v337, %v289
        %v346 = vsel %vm317, %v339, %v290
        %v349 = vsel %vm317, %v341, %v287
        %v351 = vld [vmem:[%s1] sm:$0xf]
        %v352 = vld [vmem:[%s1 + $0x4] sm:$0xf]
        %v353 = vld [vmem:[%s1 + $0x8] sm:$0xf]
        %v354 = vld [vmem:[%s1 + $0xc] sm:$0xf]
        %v355 = vld [vmem:[%s2] sm:$0xff]
        %v356 = vld [vmem:[%s2 + $0x8] sm:$0xff]
        %v357 = vld [vmem:[%s2 + $0x10] sm:$0xff]
        %v358 = vld [vmem:[%s2 + $0x18] sm:$0xff]
        %360 = vset.pattern.permute.xlu0 0
        %361 = vperm.xlu0 %360, %v355
        %v362 = vpop.permute.xlu0 %361
        %365 = vset.pattern.permute.xlu0 0
        %366 = vperm.xlu0 %365, %v356
        %v367 = vpop.permute.xlu0 %366
        %370 = vset.pattern.permute.xlu0 0
        %371 = vperm.xlu0 %370, %v357
        %v372 = vpop.permute.xlu0 %371
        %375 = vset.pattern.permute.xlu0 0
        %376 = vperm.xlu0 %375, %v358
        %v377 = vpop.permute.xlu0 %376
        %v383 = vunpack.c.l.b16 %v351
        %v384 = vunpack.c.l.b16 %v352
        %v385 = vunpack.c.l.b16 %v353
        %v386 = vunpack.c.l.b16 %v354
        %v387 = vpack.c.b16 %v384, %v383
        %v388 = vpack.c.b16 %v386, %v385
        %vm389 = vcmask 293888
        %v391 = vsel %vm389, %v387, 0
        %v394 = vsel %vm389, %v388, 0
        %v397 = vsel %vm300, %v298, 0
        %v400 = vsel %vm300, %v299, 0
        %v403 = vsel %vm300, %v296, 0
        %405 = vmatprep.subr.bf16.mxu0 0
        %406 = vmatpush1.bf16.msra.mxu0 0
        %407 = vmatprep.subr.bf16.mxu0 0
        %408 = vmatpush1.bf16.msra.mxu0 0
        %409 = vmatprep.subr.bf16.mxu0 0
        %410 = vmatpush1.bf16.msra.mxu0 0
        %411 = vmatprep.subr.bf16.mxu0 0
        %412 = vmatpush1.bf16.msra.mxu0 0
        %413 = vmatprep.subr.bf16.mxu0 0
        %414 = vmatpush1.bf16.msra.mxu0 0
        %415 = vmatprep.subr.bf16.mxu0 %v400
        %416 = vmatpush1.bf16.msra.mxu0 %v397
        %417 = vmatprep.subr.bf16.mxu0 %v346
        %418 = vmatpush1.bf16.msra.mxu0 %v343
        %419 = vmatprep.subr.bf16.mxu0 %v322
        %420 = vmatpush1.bf16.msra.mxu0 %v319
        %421 = vmatprep.subr.bf16.mxu0 0
        %422 = vmatpush2.bf16.msra.mxu0 0
        %423 = vmatprep.subr.bf16.mxu0 0
        %424 = vmatpush2.bf16.msra.mxu0 0
        %425 = vmatprep.subr.bf16.mxu0 0
        %426 = vmatpush2.bf16.msra.mxu0 0
        %427 = vmatprep.subr.bf16.mxu0 0
        %428 = vmatpush2.bf16.msra.mxu0 0
        %429 = vmatprep.subr.bf16.mxu0 0
        %430 = vmatpush2.bf16.msra.mxu0 0
        %431 = vmatprep.subr.bf16.mxu0 0
        %432 = vmatpush2.bf16.msra.mxu0 0
        %433 = vmatprep.subr.bf16.mxu0 0
        %434 = vmatpush2.bf16.msra.mxu0 0
        %435 = vmatprep.subr.bf16.mxu0 0
        %436 = vmatpush2.bf16.msra.mxu0 0
        %437 = vmatprep.mubr.bf16.mxu0 0
        %438 = vmatmul.mubr.bf16.gmra.mxu0 %v391
        %v439 = vpop.f32.mrf.mxu0
        %v440 = vadd.f32 %v362, %v439
        %v441 = vpop.f32.mrf.mxu0
        %v442 = vadd.f32 %v362, %v441
        %v443 = vpop.f32.mrf.mxu0
        %v444 = vadd.f32 %v367, %v443
        %v445 = vpop.f32.mrf.mxu0
        %v446 = vadd.f32 %v367, %v445
        %447 = vmatprep.mubr.bf16.mxu0 0
        %448 = vmatmul.mubr.bf16.gmra.mxu0 %v394
        %v449 = vpop.f32.mrf.mxu0
        %v450 = vadd.f32 %v372, %v449
        %v451 = vpop.f32.mrf.mxu0
        %v452 = vadd.f32 %v372, %v451
        %v453 = vpop.f32.mrf.mxu0
        %v454 = vadd.f32 %v377, %v453
        %v455 = vpop.f32.mrf.mxu0
        %v456 = vadd.f32 %v377, %v455
        %457 = vdwg.mxu0
        %458 = vmatprep.subr.bf16.mxu0 0
        %459 = vmatpush1.bf16.msra.mxu0 0
        %460 = vmatprep.subr.bf16.mxu0 0
        %461 = vmatpush1.bf16.msra.mxu0 0
        %462 = vmatprep.subr.bf16.mxu0 0
        %463 = vmatpush1.bf16.msra.mxu0 0
        %464 = vmatprep.subr.bf16.mxu0 0
        %465 = vmatpush1.bf16.msra.mxu0 0
        %466 = vmatprep.subr.bf16.mxu0 0
        %467 = vmatpush1.bf16.msra.mxu0 0
        %468 = vmatprep.subr.bf16.mxu0 0
        %469 = vmatpush1.bf16.msra.mxu0 %v403
        %470 = vmatprep.subr.bf16.mxu0 0
        %471 = vmatpush1.bf16.msra.mxu0 %v349
        %472 = vmatprep.subr.bf16.mxu0 0
        %473 = vmatpush1.bf16.msra.mxu0 %v325
        %474 = vmatprep.subr.bf16.mxu0 0
        %475 = vmatpush2.bf16.msra.mxu0 0
        %476 = vmatprep.subr.bf16.mxu0 0
        %477 = vmatpush2.bf16.msra.mxu0 0
        %478 = vmatprep.subr.bf16.mxu0 0
        %479 = vmatpush2.bf16.msra.mxu0 0
        %480 = vmatprep.subr.bf16.mxu0 0
        %481 = vmatpush2.bf16.msra.mxu0 0
        %482 = vmatprep.subr.bf16.mxu0 0
        %483 = vmatpush2.bf16.msra.mxu0 0
        %484 = vmatprep.subr.bf16.mxu0 0
        %485 = vmatpush2.bf16.msra.mxu0 0
        %486 = vmatprep.subr.bf16.mxu0 0
        %487 = vmatpush2.bf16.msra.mxu0 0
        %488 = vmatprep.subr.bf16.mxu0 0
        %489 = vmatpush2.bf16.msra.mxu0 0
        %490 = vmatprep.mubr.bf16.mxu0 0
        %491 = vmatmul.mubr.bf16.gmra.mxu0 %v391
        %v492 = vpop.f32.mrf.mxu0
        %v493 = vadd.f32 %v362, %v492
        %v494 = vpop.f32.mrf.mxu0
        %v495 = vpop.f32.mrf.mxu0
        %v496 = vadd.f32 %v367, %v495
        %v497 = vpop.f32.mrf.mxu0
        %498 = vmatprep.mubr.bf16.mxu0 0
        %499 = vmatmul.mubr.bf16.gmra.mxu0 %v394
        %v500 = vpop.f32.mrf.mxu0
        %v501 = vadd.f32 %v372, %v500
        %v502 = vpop.f32.mrf.mxu0
        %v503 = vpop.f32.mrf.mxu0
        %v504 = vadd.f32 %v377, %v503
        %v505 = vpop.f32.mrf.mxu0
        %506 = vdwg.mxu0
        %v507 = vmax.f32 %v440, 0.0
        %v508 = vmax.f32 %v442, 0.0
        %v509 = vmax.f32 %v493, 0.0
        %v510 = vmax.f32 %v444, 0.0
        %v511 = vmax.f32 %v446, 0.0
        %v512 = vmax.f32 %v496, 0.0
        %v513 = vmax.f32 %v450, 0.0
        %v514 = vmax.f32 %v452, 0.0
        %v515 = vmax.f32 %v501, 0.0
        %v516 = vmax.f32 %v454, 0.0
        %v517 = vmax.f32 %v456, 0.0
        %v518 = vmax.f32 %v504, 0.0
        %523 = vrot.lane.b32.xlu0 %v507, 126
        %v524 = vpop.permute.xlu0 %523
        %525 = vrot.lane.b32.xlu0 %v510, 126
        %v526 = vpop.permute.xlu0 %525
        %527 = vrot.lane.b32.xlu0 %v513, 126
        %v528 = vpop.permute.xlu0 %527
        %529 = vrot.lane.b32.xlu0 %v516, 126
        %v530 = vpop.permute.xlu0 %529
        %535 = vrot.lane.b32.xlu0 %v507, 124
        %v536 = vpop.permute.xlu0 %535
        %537 = vrot.lane.b32.xlu0 %v510, 124
        %v538 = vpop.permute.xlu0 %537
        %539 = vrot.lane.b32.xlu0 %v513, 124
        %v540 = vpop.permute.xlu0 %539
        %541 = vrot.lane.b32.xlu0 %v516, 124
        %v542 = vpop.permute.xlu0 %541
        %547 = vrot.lane.b32.xlu0 %v507, 122
        %v548 = vpop.permute.xlu0 %547
        %549 = vrot.lane.b32.xlu0 %v510, 122
        %v550 = vpop.permute.xlu0 %549
        %551 = vrot.lane.b32.xlu0 %v513, 122
        %v552 = vpop.permute.xlu0 %551
        %553 = vrot.lane.b32.xlu0 %v516, 122
        %v554 = vpop.permute.xlu0 %553
        %559 = vrot.lane.b32.xlu0 %v507, 120
        %v560 = vpop.permute.xlu0 %559
        %561 = vrot.lane.b32.xlu0 %v510, 120
        %v562 = vpop.permute.xlu0 %561
        %563 = vrot.lane.b32.xlu0 %v513, 120
        %v564 = vpop.permute.xlu0 %563
        %565 = vrot.lane.b32.xlu0 %v516, 120
        %v566 = vpop.permute.xlu0 %565
        %571 = vrot.lane.b32.xlu0 %v507, 118
        %v572 = vpop.permute.xlu0 %571
        %573 = vrot.lane.b32.xlu0 %v510, 118
        %v574 = vpop.permute.xlu0 %573
        %575 = vrot.lane.b32.xlu0 %v513, 118
        %v576 = vpop.permute.xlu0 %575
        %577 = vrot.lane.b32.xlu0 %v516, 118
        %v578 = vpop.permute.xlu0 %577
        %583 = vrot.lane.b32.xlu0 %v507, 116
        %v584 = vpop.permute.xlu0 %583
        %585 = vrot.lane.b32.xlu0 %v510, 116
        %v586 = vpop.permute.xlu0 %585
        %587 = vrot.lane.b32.xlu0 %v513, 116
        %v588 = vpop.permute.xlu0 %587
        %589 = vrot.lane.b32.xlu0 %v516, 116
        %v590 = vpop.permute.xlu0 %589
        %599 = vrot.lane.b32.xlu0 %v507, 114
        %v600 = vpop.permute.xlu0 %599
        %601 = vrot.lane.b32.xlu0 %v508, 114
        %v602 = vpop.permute.xlu0 %601
        %603 = vrot.lane.b32.xlu0 %v510, 114
        %v604 = vpop.permute.xlu0 %603
        %605 = vrot.lane.b32.xlu0 %v511, 114
        %v606 = vpop.permute.xlu0 %605
        %607 = vrot.lane.b32.xlu0 %v513, 114
        %v608 = vpop.permute.xlu0 %607
        %609 = vrot.lane.b32.xlu0 %v514, 114
        %v610 = vpop.permute.xlu0 %609
        %611 = vrot.lane.b32.xlu0 %v516, 114
        %v612 = vpop.permute.xlu0 %611
        %613 = vrot.lane.b32.xlu0 %v517, 114
        %v614 = vpop.permute.xlu0 %613
        %vm615 = vcmask 932864
        %v616 = vsel %vm615, %v600, %v602
        %v617 = vsel %vm615, %v604, %v606
        %v618 = vsel %vm615, %v608, %v610
        %v619 = vsel %vm615, %v612, %v614
        %624 = vrot.lane.b32.xlu0 %v508, 112
        %v625 = vpop.permute.xlu0 %624
        %626 = vrot.lane.b32.xlu0 %v511, 112
        %v627 = vpop.permute.xlu0 %626
        %628 = vrot.lane.b32.xlu0 %v514, 112
        %v629 = vpop.permute.xlu0 %628
        %630 = vrot.lane.b32.xlu0 %v517, 112
        %v631 = vpop.permute.xlu0 %630
        %636 = vrot.lane.b32.xlu0 %v508, 110
        %v637 = vpop.permute.xlu0 %636
        %638 = vrot.lane.b32.xlu0 %v511, 110
        %v639 = vpop.permute.xlu0 %638
        %640 = vrot.lane.b32.xlu0 %v514, 110
        %v641 = vpop.permute.xlu0 %640
        %642 = vrot.lane.b32.xlu0 %v517, 110
        %v643 = vpop.permute.xlu0 %642
        %648 = vrot.lane.b32.xlu0 %v508, 108
        %v649 = vpop.permute.xlu0 %648
        %650 = vrot.lane.b32.xlu0 %v511, 108
        %v651 = vpop.permute.xlu0 %650
        %652 = vrot.lane.b32.xlu0 %v514, 108
        %v653 = vpop.permute.xlu0 %652
        %654 = vrot.lane.b32.xlu0 %v517, 108
        %v655 = vpop.permute.xlu0 %654
        %660 = vrot.lane.b32.xlu0 %v508, 106
        %v661 = vpop.permute.xlu0 %660
        %662 = vrot.lane.b32.xlu0 %v511, 106
        %v663 = vpop.permute.xlu0 %662
        %664 = vrot.lane.b32.xlu0 %v514, 106
        %v665 = vpop.permute.xlu0 %664
        %666 = vrot.lane.b32.xlu0 %v517, 106
        %v667 = vpop.permute.xlu0 %666
        %672 = vrot.lane.b32.xlu0 %v508, 104
        %v673 = vpop.permute.xlu0 %672
        %674 = vrot.lane.b32.xlu0 %v511, 104
        %v675 = vpop.permute.xlu0 %674
        %676 = vrot.lane.b32.xlu0 %v514, 104
        %v677 = vpop.permute.xlu0 %676
        %678 = vrot.lane.b32.xlu0 %v517, 104
        %v679 = vpop.permute.xlu0 %678
        %684 = vrot.lane.b32.xlu0 %v508, 102
        %v685 = vpop.permute.xlu0 %684
        %686 = vrot.lane.b32.xlu0 %v511, 102
        %v687 = vpop.permute.xlu0 %686
        %688 = vrot.lane.b32.xlu0 %v514, 102
        %v689 = vpop.permute.xlu0 %688
        %690 = vrot.lane.b32.xlu0 %v517, 102
        %v691 = vpop.permute.xlu0 %690
        %700 = vrot.lane.b32.xlu0 %v508, 100
        %v701 = vpop.permute.xlu0 %700
        %702 = vrot.lane.b32.xlu0 %v509, 100
        %v703 = vpop.permute.xlu0 %702
        %704 = vrot.lane.b32.xlu0 %v511, 100
        %v705 = vpop.permute.xlu0 %704
        %706 = vrot.lane.b32.xlu0 %v512, 100
        %v707 = vpop.permute.xlu0 %706
        %708 = vrot.lane.b32.xlu0 %v514, 100
        %v709 = vpop.permute.xlu0 %708
        %710 = vrot.lane.b32.xlu0 %v515, 100
        %v711 = vpop.permute.xlu0 %710
        %712 = vrot.lane.b32.xlu0 %v517, 100
        %v713 = vpop.permute.xlu0 %712
        %714 = vrot.lane.b32.xlu0 %v518, 100
        %v715 = vpop.permute.xlu0 %714
        %vm716 = vcmask 818176
        %v717 = vsel %vm716, %v701, %v703
        %v718 = vsel %vm716, %v705, %v707
        %v719 = vsel %vm716, %v709, %v711
        %v720 = vsel %vm716, %v713, %v715
        %725 = vrot.lane.b32.xlu0 %v509, 98
        %v726 = vpop.permute.xlu0 %725
        %727 = vrot.lane.b32.xlu0 %v512, 98
        %v728 = vpop.permute.xlu0 %727
        %729 = vrot.lane.b32.xlu0 %v515, 98
        %v730 = vpop.permute.xlu0 %729
        %731 = vrot.lane.b32.xlu0 %v518, 98
        %v732 = vpop.permute.xlu0 %731
        %vm737 = vcmask 130048
        %v738 = vsel %vm737, %v507, %v524
        %v739 = vsel %vm737, %v510, %v526
        %v740 = vsel %vm737, %v513, %v528
        %v741 = vsel %vm737, %v516, %v530
        %vm742 = vcmask 261120
        %v743 = vsel %vm742, %v738, %v536
        %v744 = vsel %vm742, %v739, %v538
        %v745 = vsel %vm742, %v740, %v540
        %v746 = vsel %vm742, %v741, %v542
        %vm747 = vcmask 392192
        %v748 = vsel %vm747, %v743, %v548
        %v749 = vsel %vm747, %v744, %v550
        %v750 = vsel %vm747, %v745, %v552
        %v751 = vsel %vm747, %v746, %v554
        %vm752 = vcmask 523264
        %v753 = vsel %vm752, %v748, %v560
        %v754 = vsel %vm752, %v749, %v562
        %v755 = vsel %vm752, %v750, %v564
        %v756 = vsel %vm752, %v751, %v566
        %vm757 = vcmask 654336
        %v758 = vsel %vm757, %v753, %v572
        %v759 = vsel %vm757, %v754, %v574
        %v760 = vsel %vm757, %v755, %v576
        %v761 = vsel %vm757, %v756, %v578
        %vm762 = vcmask 785408
        %v763 = vsel %vm762, %v758, %v584
        %v764 = vsel %vm762, %v759, %v586
        %v765 = vsel %vm762, %v760, %v588
        %v766 = vsel %vm762, %v761, %v590
        %vm767 = vcmask 916480
        %v768 = vsel %vm767, %v763, %v616
        %v769 = vsel %vm767, %v764, %v617
        %v770 = vsel %vm767, %v765, %v618
        %v771 = vsel %vm767, %v766, %v619
        %v772 = vsel %vm737, %v625, %v637
        %v773 = vsel %vm737, %v627, %v639
        %v774 = vsel %vm737, %v629, %v641
        %v775 = vsel %vm737, %v631, %v643
        %v776 = vsel %vm742, %v772, %v649
        %v777 = vsel %vm742, %v773, %v651
        %v778 = vsel %vm742, %v774, %v653
        %v779 = vsel %vm742, %v775, %v655
        %v780 = vsel %vm747, %v776, %v661
        %v781 = vsel %vm747, %v777, %v663
        %v782 = vsel %vm747, %v778, %v665
        %v783 = vsel %vm747, %v779, %v667
        %v784 = vsel %vm752, %v780, %v673
        %v785 = vsel %vm752, %v781, %v675
        %v786 = vsel %vm752, %v782, %v677
        %v787 = vsel %vm752, %v783, %v679
        %v788 = vsel %vm757, %v784, %v685
        %v789 = vsel %vm757, %v785, %v687
        %v790 = vsel %vm757, %v786, %v689
        %v791 = vsel %vm757, %v787, %v691
        %v792 = vsel %vm762, %v788, %v717
        %v793 = vsel %vm762, %v789, %v718
        %v794 = vsel %vm762, %v790, %v719
        %v795 = vsel %vm762, %v791, %v720
        %v796 = vsel %vm767, %v792, %v726
        %v797 = vsel %vm767, %v793, %v728
        %v798 = vsel %vm767, %v794, %v730
        %v799 = vsel %vm767, %v795, %v732
        %800 = vst [vmem:[%s187] sm:$0xff] %v768
        %801 = vst [vmem:[%s187 + $0x8] sm:$0xff] %v796
        %802 = vst [vmem:[%s187 + $0x10] sm:$0xff] %v769
        %803 = vst [vmem:[%s187 + $0x18] sm:$0xff] %v797
        %804 = vst [vmem:[%s187 + $0x20] sm:$0xff] %v770
        %805 = vst [vmem:[%s187 + $0x28] sm:$0xff] %v798
        %806 = vst [vmem:[%s187 + $0x30] sm:$0xff] %v771
        %807 = vst [vmem:[%s187 + $0x38] sm:$0xff] %v799
        %s808 = sand.u32 %s109, 1
        %s809 = scalar_lea.sflag [#allocation3], %s808
        %s810 = sand.u32 %s109, 1
        %s811 = smul.addr %s810, 64
        %s812 = scalar_lea.vmem [#allocation2], %s811
        // Predicated region
        $region33: #{tpu_custom_call.1} parent=31 // pred_check
          %p813 = pneg %p119
        $region34: #{tpu_custom_call.1} parent=31 // pred_check_branch
          %815 = sbr.rel (%p813) target = $region36
        $region35: #{tpu_custom_call.1} parent=31 // pred_region
          %s817 = ssub.s32 1024, 1024
          %818 = vsyncadd %s809, %s817
          %s819 = smul.addr %s22, 8
          %s820 = smul.addr %s21, 8
          %s821 = sadd.s32 %s819, %s820
          %s822 = smul.addr %s821, 128
          %s823 = scalar_lea.hbm %s3, %s822
          %s824 = sshll.u32 %s812, 4
          %s825 = int_to_ptr.vmem [resolvable:$true] %s824
          %830 = dma.vmem_to_hbm [thread:$0]  %s825, 1024, %s823, %s809, 256, 256, 16
        $region36: #{tpu_custom_call.1} parent=31 // pred_fallthru
          _
      $region32: #{tpu_custom_call.1} parent=5 // pred_fallthru
        _
      %p831 = scmp.le.s32.totalorder 2, %s12
      // Predicated region
      $region37: #{tpu_custom_call.1} parent=5 // pred_check
        %p832 = pneg %p831
      $region38: #{tpu_custom_call.1} parent=5 // pred_check_branch
        %834 = sbr.rel (%p832) target = $region40
      $region39: #{tpu_custom_call.1} parent=5 // pred_region
        %s835 = ssub.s32 %s12, 2
        // Predicated region
        $region41: #{tpu_custom_call.1} parent=39 // pred_check
          %p836 = pneg %p125
        $region42: #{tpu_custom_call.1} parent=39 // pred_check_branch
          %838 = sbr.rel (%p836) target = $region44
        $region43: #{tpu_custom_call.1} parent=39 // pred_region
          %s839 = sand.u32 %s110, 1
          %s840 = scalar_lea.sflag [#allocation3], %s839
          %s841 = sand.u32 %s110, 1
          %s842 = smul.addr %s841, 64
          %s843 = scalar_lea.vmem [#allocation2], %s842
          %844 = dma.done %s840, 1024
        $region44: #{tpu_custom_call.1} parent=39 // pred_fallthru
          _
      $region40: #{tpu_custom_call.1} parent=5 // pred_fallthru
        _
    $region6: #{tpu_custom_call.1} parent=1 // loop_footer
      %s16 = sadd.s32 1, %s12
    $region7: #{tpu_custom_call.1} parent=1 // loop_footer_branch
      %11 = sbr.rel target = $region3
    $region8: #{tpu_custom_call.1} parent=1 // loop_exit
      _
    %845 = vsyncpa [#allocation3], 1
    %s846 = scalar_lea.sflag [#allocation3], 1
    %847 = vsyncpa %s846, 1

</llo_original>
